<compile_context>
chip_gen: v7x
topology: tpu7x:2x2x1
jax: 0.10.0
libtpu: 0.0.40
codegen_flags: <defaults>
</compile_context>

<pallas_src>
import jax
import jax.numpy as jnp
from jax.experimental import pallas as pl
from jax.experimental.pallas import tpu as pltpu

# ----------------------------- configuration -----------------------------
NUM_NODES_VOCAB = 32   # nn.Embedding(num_nodes, hidden_channels) vocab size
HIDDEN = 32            # hidden_channels
OUT = 16               # out_channels
NUM_LAYERS = 1
N = 16                 # number of nodes in the batched graph
E = 40                 # number of edges
B = 2                  # number of graphs in the batch


# ------------------------------- kernel ----------------------------------
def gcn_encoder_kernel(nid_ref, batch_ref, edata_ref, embw_ref, wfc_ref,
                       bias_ref, out_ref):
    # nid   : [N, 1]   int32 node ids
    # batch : [1, N]   int32 graph assignment per node
    # edata : [3, E]   f32 rows = (src, dst, edge_weight)
    # embw  : [V, H]   f32 fused (embedding_table @ W_conv)
    # wfc   : [H, O]   f32 fc weight (applied as x @ wfc)
    # bias  : [1, H+O] f32 packed (b_conv ++ b_fc)
    # out   : [B, 2*O] = concat(mean_pool, max_pool)

    # ---- embedding lookup fused with GCN linear: one MXU pass ----
    nid = nid_ref[...]                                                      # [N, 1]
    vocab_iota = jax.lax.broadcasted_iota(jnp.int32, (N, NUM_NODES_VOCAB), 1)
    sel = (nid == vocab_iota).astype(jnp.float32)                           # [N, V]
    xw = jnp.dot(sel, embw_ref[...], preferred_element_type=jnp.float32)    # [N, H]

    # ---- weighted adjacency built in-kernel from the edge list ----
    edata = edata_ref[...]                                                  # [3, E]
    src_row = edata[0:1, :]                                                 # [1, E]
    dst_row = edata[1:2, :]                                                 # [1, E]
    w_row = edata[2:3, :]                                                   # [1, E]
    node_iota = jax.lax.broadcasted_iota(jnp.int32, (N, E), 0).astype(jnp.float32)
    srcw_T = jnp.where(src_row == node_iota, w_row, 0.0)                    # [N, E]
    dst_T = (dst_row == node_iota).astype(jnp.float32)                      # [N, E]
    # adj[i, j] = sum_e [dst_e == i] * [src_e == j] * w_e   ("NT" matmul)
    adj = jax.lax.dot_general(dst_T, srcw_T, (((1,), (1,)), ((), ())),
                              preferred_element_type=jnp.float32)           # [N, N]

    # ---- GCNConv (sum aggregation, no self loops, no normalization) ----
    bias = bias_ref[...]                                                    # [1, H+O]
    b_conv = bias[:, :HIDDEN]                                               # [1, H]
    b_fc = bias[:, HIDDEN:]                                                 # [1, O]
    agg = jnp.dot(adj, xw, preferred_element_type=jnp.float32)              # [N, H]
    x1 = jnp.maximum(agg + b_conv, 0.0)                                     # ReLU
    # TODO(synk): dropout is identity here (p=0.0 / eval mode), so it is omitted.

    # ---- fc without bias; per-channel bias applied after pooling ----
    y = jnp.dot(x1, wfc_ref[...], preferred_element_type=jnp.float32)       # [N, O]

    # ---- pooling matrices from the batch vector (VPU iota/compare) ----
    b_row = batch_ref[...]                                                  # [1, N]
    g_iota = jax.lax.broadcasted_iota(jnp.int32, (B, N), 0)
    mask = (b_row == g_iota).astype(jnp.float32)                            # [B, N]
    counts = jnp.sum(mask, axis=1, keepdims=True)                           # [B, 1]
    has_nodes = counts > 0.0
    pmean = mask / jnp.maximum(counts, 1.0)                                 # [B, N]

    # global mean pool:  [B, N] @ [N, O] -> [B, O]
    mean_x = jnp.dot(pmean, y, preferred_element_type=jnp.float32) + b_fc
    mean_x = jnp.where(has_nodes, mean_x, 0.0)

    # global max pool: batched masked max over nodes
    masked = jnp.where(mask[:, :, None] > 0.0, y[None, :, :], -jnp.inf)     # [B, N, O]
    max_x = jnp.max(masked, axis=1) + b_fc                                  # [B, O]
    max_x = jnp.where(has_nodes, max_x, 0.0)

    out_ref[:, :OUT] = mean_x
    out_ref[:, OUT:] = max_x


# ------------------------------- wrapper ----------------------------------
def fold_params(params):
    """Input-independent parameter folding, done once per parameter set."""
    emb, w_conv, b_conv, w_fc, b_fc = params
    emb_w = emb @ w_conv                                        # [V, H]
    bias_packed = jnp.concatenate([b_conv, b_fc]).reshape(1, HIDDEN + OUT)
    return emb_w, w_fc, bias_packed


@jax.jit
def gcn_encoder_forward(node_ids, edge_index, edge_weight, batch, folded_params):
    """node_ids: [N] int32, edge_index: [2, E] int32, edge_weight: [E] f32,
       batch: [N] int32 graph assignment; folded_params from fold_params()."""
    emb_w, w_fc, bias_packed = folded_params

    nid = node_ids.reshape(N, 1).astype(jnp.int32)
    batch_row = batch.reshape(1, N).astype(jnp.int32)
    edata = jnp.concatenate([edge_index.astype(jnp.float32),
                             edge_weight.reshape(1, E)], axis=0)            # [3, E]

    vmem = pl.BlockSpec(memory_space=pltpu.MemorySpace.VMEM)
    return pl.pallas_call(
        gcn_encoder_kernel,
        out_shape=jax.ShapeDtypeStruct((B, 2 * OUT), jnp.float32),
        in_specs=[vmem] * 6,
        out_specs=vmem,
    )(nid, batch_row, edata, emb_w, w_fc, bias_packed)


# ----------------------- pure-JAX reference (for checking) -----------------
def gcn_encoder_reference(node_ids, edge_index, edge_weight, batch, params):
    emb, w_conv, b_conv, w_fc, b_fc = params
    h0 = jnp.take(emb, node_ids, axis=0)
    src, dst = edge_index[0], edge_index[1]
    adj = jnp.zeros((N, N), jnp.float32).at[dst, src].add(edge_weight)
    x1 = jnp.maximum(adj @ (h0 @ w_conv) + b_conv[None, :], 0.0)
    y = x1 @ w_fc + b_fc[None, :]
    onehot = (batch[None, :] == jnp.arange(B, dtype=batch.dtype)[:, None]).astype(jnp.float32)
    counts = jnp.maximum(onehot.sum(axis=1, keepdims=True), 1.0)
    mean_x = (onehot / counts) @ y
    masked = jnp.where(onehot[:, :, None] > 0.0, y[None, :, :], -jnp.inf)
    max_x = jnp.max(masked, axis=1)
    return jnp.concatenate([mean_x, max_x], axis=1)


# ----------------------- deterministic parameter init ----------------------
def init_params(key):
    k0, k1, k2, k3, k4 = jax.random.split(key, 5)
    emb = jax.random.normal(k0, (NUM_NODES_VOCAB, HIDDEN), jnp.float32) * 0.1
    # GCNConv linear weight stored so that application is x @ w_conv
    w_conv = jax.random.normal(k1, (HIDDEN, HIDDEN), jnp.float32) * (1.0 / HIDDEN ** 0.5)
    b_conv = jax.random.normal(k2, (HIDDEN,), jnp.float32) * 0.01
    # fc: Linear(HIDDEN, OUT), applied as x @ w_fc + b_fc
    w_fc = jax.random.normal(k3, (HIDDEN, OUT), jnp.float32) * (1.0 / HIDDEN ** 0.5)
    b_fc = jax.random.normal(k4, (OUT,), jnp.float32) * 0.01
    return emb, w_conv, b_conv, w_fc, b_fc


# --------------------------------- main ------------------------------------
if __name__ == "__main__":
    key = jax.random.PRNGKey(0)
    kp, ki, ks0, kd0, ks1, kd1, kw = jax.random.split(key, 7)

    params = init_params(kp)
    folded = fold_params(params)   # once per parameter set (input independent)

    # synthetic graph batch: 16 nodes, 2 graphs (nodes 0..7 -> graph 0, 8..15 -> graph 1)
    node_ids = jax.random.randint(ki, (N,), 0, NUM_NODES_VOCAB, dtype=jnp.int32)
    batch = jnp.concatenate([jnp.zeros(N // 2, jnp.int32), jnp.ones(N // 2, jnp.int32)])

    # edges kept within each graph's node range (independent keys per draw)
    src0 = jax.random.randint(ks0, (E // 2,), 0, N // 2, dtype=jnp.int32)
    dst0 = jax.random.randint(kd0, (E // 2,), 0, N // 2, dtype=jnp.int32)
    src1 = jax.random.randint(ks1, (E // 2,), N // 2, N, dtype=jnp.int32)
    dst1 = jax.random.randint(kd1, (E // 2,), N // 2, N, dtype=jnp.int32)
    edge_index = jnp.stack([jnp.concatenate([src0, src1]),
                            jnp.concatenate([dst0, dst1])], axis=0)
    edge_weight = jax.random.uniform(kw, (E,), jnp.float32, 0.1, 1.0)

    out = gcn_encoder_forward(node_ids, edge_index, edge_weight, batch, folded)
    out = jax.block_until_ready(out)
    assert out.shape == (B, 2 * OUT)

    ref = gcn_encoder_reference(node_ids, edge_index, edge_weight, batch, params)
    assert jnp.allclose(out, ref, atol=1e-3, rtol=1e-3), "mismatch vs pure-JAX reference"

    print("KERNEL_OK")
</pallas_src>

<mosaic_0001>
module attributes {stable_mosaic.version = 11 : i64} {
  func.func @gcn_encoder_kernel(%arg0: memref<16x1xi32, #tpu.memory_space<vmem>>, %arg1: memref<1x16xi32, #tpu.memory_space<vmem>>, %arg2: memref<3x40xf32, #tpu.memory_space<vmem>>, %arg3: memref<32x32xf32, #tpu.memory_space<vmem>>, %arg4: memref<32x16xf32, #tpu.memory_space<vmem>>, %arg5: memref<1x48xf32, #tpu.memory_space<vmem>>, %arg6: memref<2x32xf32, #tpu.memory_space<vmem>>) attributes {dimension_semantics = [], scalar_prefetch = 0 : i64, scratch_operands = 0 : i64, tpu.core_type = #tpu.core_type<tc>} {
    %c0 = arith.constant 0 : index
    %c0_0 = arith.constant 0 : index
    %0 = vector.load %arg0[%c0, %c0_0] : memref<16x1xi32, #tpu.memory_space<vmem>>, vector<16x1xi32>
    %1 = tpu.iota {dimensions = array<i32: 1>} : vector<16x32xi32>
    %2 = vector.broadcast %0 : vector<16x1xi32> to vector<16x32xi32>
    %3 = arith.cmpi eq, %2, %1 : vector<16x32xi32>
    %4 = arith.extui %3 : vector<16x32xi1> to vector<16x32xi32>
    %5 = arith.sitofp %4 : vector<16x32xi32> to vector<16x32xf32>
    %c0_1 = arith.constant 0 : index
    %c0_2 = arith.constant 0 : index
    %6 = vector.load %arg3[%c0_1, %c0_2] : memref<32x32xf32, #tpu.memory_space<vmem>>, vector<32x32xf32>
    %cst = arith.constant dense<0.000000e+00> : vector<16x32xf32>
    %7 = tpu.matmul %5, %6, %cst {dimension_numbers = #tpu.dot_dimension_numbers<[1], [0], [0], [1], [0, 0, 1, 1], [], []>} : vector<16x32xf32>, vector<32x32xf32>, vector<16x32xf32> -> vector<16x32xf32>
    %c0_3 = arith.constant 0 : index
    %c0_4 = arith.constant 0 : index
    %8 = vector.load %arg2[%c0_3, %c0_4] : memref<3x40xf32, #tpu.memory_space<vmem>>, vector<3x40xf32>
    %9 = vector.extract_strided_slice %8 {offsets = [0, 0], sizes = [1, 40], strides = [1, 1]} : vector<3x40xf32> to vector<1x40xf32>
    %10 = vector.extract_strided_slice %8 {offsets = [1, 0], sizes = [1, 40], strides = [1, 1]} : vector<3x40xf32> to vector<1x40xf32>
    %11 = vector.extract_strided_slice %8 {offsets = [2, 0], sizes = [1, 40], strides = [1, 1]} : vector<3x40xf32> to vector<1x40xf32>
    %12 = tpu.iota {dimensions = array<i32: 0>} : vector<16x40xi32>
    %13 = arith.sitofp %12 : vector<16x40xi32> to vector<16x40xf32>
    %14 = vector.broadcast %9 : vector<1x40xf32> to vector<16x40xf32>
    %15 = arith.cmpf oeq, %14, %13 : vector<16x40xf32>
    %cst_5 = arith.constant 0.000000e+00 : f32
    %16 = vector.shape_cast %11 : vector<1x40xf32> to vector<1x40xf32>
    %17 = vector.broadcast %16 : vector<1x40xf32> to vector<16x40xf32>
    %18 = vector.broadcast %cst_5 : f32 to vector<16x40xf32>
    %19 = arith.select %15, %17, %18 : vector<16x40xi1>, vector<16x40xf32>
    %20 = vector.broadcast %10 : vector<1x40xf32> to vector<16x40xf32>
    %21 = arith.cmpf oeq, %20, %13 : vector<16x40xf32>
    %22 = arith.extui %21 : vector<16x40xi1> to vector<16x40xi32>
    %23 = arith.sitofp %22 : vector<16x40xi32> to vector<16x40xf32>
    %cst_6 = arith.constant dense<0.000000e+00> : vector<16x16xf32>
    %24 = tpu.matmul %23, %19, %cst_6 {dimension_numbers = #tpu.dot_dimension_numbers<[1], [1], [0], [0], [0, 0, 1, 0], [], []>} : vector<16x40xf32>, vector<16x40xf32>, vector<16x16xf32> -> vector<16x16xf32>
    %c0_7 = arith.constant 0 : index
    %c0_8 = arith.constant 0 : index
    %25 = vector.load %arg5[%c0_7, %c0_8] : memref<1x48xf32, #tpu.memory_space<vmem>>, vector<1x48xf32>
    %26 = vector.extract_strided_slice %25 {offsets = [0, 0], sizes = [1, 32], strides = [1, 1]} : vector<1x48xf32> to vector<1x32xf32>
    %27 = vector.extract_strided_slice %25 {offsets = [0, 32], sizes = [1, 16], strides = [1, 1]} : vector<1x48xf32> to vector<1x16xf32>
    %cst_9 = arith.constant dense<0.000000e+00> : vector<16x32xf32>
    %28 = tpu.matmul %24, %7, %cst_9 {dimension_numbers = #tpu.dot_dimension_numbers<[1], [0], [0], [1], [0, 0, 1, 1], [], []>} : vector<16x16xf32>, vector<16x32xf32>, vector<16x32xf32> -> vector<16x32xf32>
    %29 = vector.broadcast %26 : vector<1x32xf32> to vector<16x32xf32>
    %30 = arith.addf %28, %29 : vector<16x32xf32>
    %cst_10 = arith.constant 0.000000e+00 : f32
    %31 = vector.broadcast %cst_10 : f32 to vector<16x32xf32>
    %32 = arith.maximumf %30, %31 : vector<16x32xf32>
    %c0_11 = arith.constant 0 : index
    %c0_12 = arith.constant 0 : index
    %33 = vector.load %arg4[%c0_11, %c0_12] : memref<32x16xf32, #tpu.memory_space<vmem>>, vector<32x16xf32>
    %cst_13 = arith.constant dense<0.000000e+00> : vector<16x16xf32>
    %34 = tpu.matmul %32, %33, %cst_13 {dimension_numbers = #tpu.dot_dimension_numbers<[1], [0], [0], [1], [0, 0, 1, 1], [], []>} : vector<16x32xf32>, vector<32x16xf32>, vector<16x16xf32> -> vector<16x16xf32>
    %c0_14 = arith.constant 0 : index
    %c0_15 = arith.constant 0 : index
    %35 = vector.load %arg1[%c0_14, %c0_15] : memref<1x16xi32, #tpu.memory_space<vmem>>, vector<1x16xi32>
    %36 = tpu.iota {dimensions = array<i32: 0>} : vector<2x16xi32>
    %37 = vector.broadcast %35 : vector<1x16xi32> to vector<2x16xi32>
    %38 = arith.cmpi eq, %37, %36 : vector<2x16xi32>
    %39 = arith.extui %38 : vector<2x16xi1> to vector<2x16xi32>
    %40 = arith.sitofp %39 : vector<2x16xi32> to vector<2x16xf32>
    %cst_16 = arith.constant dense<0.000000e+00> : vector<2xf32>
    %41 = vector.multi_reduction <add>, %40, %cst_16 [1] : vector<2x16xf32> to vector<2xf32>
    %42 = vector.shape_cast %41 : vector<2xf32> to vector<2x1xf32>
    %cst_17 = arith.constant 0.000000e+00 : f32
    %43 = vector.broadcast %cst_17 : f32 to vector<2x1xf32>
    %44 = arith.cmpf ogt, %42, %43 : vector<2x1xf32>
    %cst_18 = arith.constant 1.000000e+00 : f32
    %45 = vector.broadcast %cst_18 : f32 to vector<2x1xf32>
    %46 = arith.maximumf %42, %45 : vector<2x1xf32>
    %47 = vector.broadcast %46 : vector<2x1xf32> to vector<2x16xf32>
    %48 = arith.divf %40, %47 : vector<2x16xf32>
    %cst_19 = arith.constant dense<0.000000e+00> : vector<2x16xf32>
    %49 = tpu.matmul %48, %34, %cst_19 {dimension_numbers = #tpu.dot_dimension_numbers<[1], [0], [0], [1], [0, 0, 1, 1], [], []>} : vector<2x16xf32>, vector<16x16xf32>, vector<2x16xf32> -> vector<2x16xf32>
    %50 = vector.broadcast %27 : vector<1x16xf32> to vector<2x16xf32>
    %51 = arith.addf %49, %50 : vector<2x16xf32>
    %cst_20 = arith.constant 0.000000e+00 : f32
    %52 = vector.shape_cast %44 : vector<2x1xi1> to vector<2x1xi1>
    %53 = vector.broadcast %52 : vector<2x1xi1> to vector<2x16xi1>
    %54 = vector.broadcast %cst_20 : f32 to vector<2x16xf32>
    %55 = arith.select %53, %51, %54 : vector<2x16xi1>, vector<2x16xf32>
    %56 = vector.shape_cast %40 : vector<2x16xf32> to vector<2x16x1xf32>
    %cst_21 = arith.constant 0.000000e+00 : f32
    %57 = vector.broadcast %cst_21 : f32 to vector<2x16x1xf32>
    %58 = arith.cmpf ogt, %56, %57 : vector<2x16x1xf32>
    %59 = vector.shape_cast %34 : vector<16x16xf32> to vector<1x16x16xf32>
    %cst_22 = arith.constant 0xFF800000 : f32
    %60 = vector.shape_cast %58 : vector<2x16x1xi1> to vector<2x16x1xi1>
    %61 = vector.broadcast %60 : vector<2x16x1xi1> to vector<2x16x16xi1>
    %62 = vector.shape_cast %59 : vector<1x16x16xf32> to vector<1x16x16xf32>
    %63 = vector.broadcast %62 : vector<1x16x16xf32> to vector<2x16x16xf32>
    %64 = vector.broadcast %cst_22 : f32 to vector<2x16x16xf32>
    %65 = arith.select %61, %63, %64 : vector<2x16x16xi1>, vector<2x16x16xf32>
    %cst_23 = arith.constant dense<0xFF800000> : vector<2x16xf32>
    %66 = vector.multi_reduction <maximumf>, %65, %cst_23 [1] : vector<2x16x16xf32> to vector<2x16xf32>
    %67 = vector.broadcast %27 : vector<1x16xf32> to vector<2x16xf32>
    %68 = arith.addf %66, %67 : vector<2x16xf32>
    %cst_24 = arith.constant 0.000000e+00 : f32
    %69 = vector.shape_cast %44 : vector<2x1xi1> to vector<2x1xi1>
    %70 = vector.broadcast %69 : vector<2x1xi1> to vector<2x16xi1>
    %71 = vector.broadcast %cst_24 : f32 to vector<2x16xf32>
    %72 = arith.select %70, %68, %71 : vector<2x16xi1>, vector<2x16xf32>
    %c0_25 = arith.constant 0 : index
    %c0_26 = arith.constant 0 : index
    %73 = vector.load %arg6[%c0_25, %c0_26] : memref<2x32xf32, #tpu.memory_space<vmem>>, vector<2x16xf32>
    tpu.vector_store %arg6[%c0_25, %c0_26], %55 {strides = array<i32>} : memref<2x32xf32, #tpu.memory_space<vmem>>, vector<2x16xf32>,
    %c0_27 = arith.constant 0 : index
    %c16 = arith.constant 16 : index
    %74 = vector.load %arg6[%c0_27, %c16] : memref<2x32xf32, #tpu.memory_space<vmem>>, vector<2x16xf32>
    tpu.vector_store %arg6[%c0_27, %c16], %72 {strides = array<i32>} : memref<2x32xf32, #tpu.memory_space<vmem>>, vector<2x16xf32>,
    return
  }
}

</mosaic_0001>

<llo_original>
// kernel: gcn_encoder_forward.1
$region0: #{gcn_encoder_forward.1}
  #allocation0 [shape = 'u32[]', space=smem, size = 0x4, offset = 0x4, fixed_abs, tag = 'smem constant byte address 0x4 - core index']
  #allocation1 [shape = 'u32[144,128]{1,0:T(1,128)}', space=vmem, size = 0x12000, scoped, tag = 'internal scratch']
  %s0 = inlined_call_operand.vmem [shape: s32[16,1], index: 0, kind: input, shape index: {}]
  %s1 = inlined_call_operand.vmem [shape: s32[1,16], index: 1, kind: input, shape index: {}]
  %s2 = inlined_call_operand.vmem [shape: f32[3,40], index: 2, kind: input, shape index: {}]
  %s3 = inlined_call_operand.vmem [shape: f32[32,32], index: 3, kind: input, shape index: {}]
  %s4 = inlined_call_operand.vmem [shape: f32[32,16], index: 4, kind: input, shape index: {}]
  %s5 = inlined_call_operand.vmem [shape: f32[1,48], index: 5, kind: input, shape index: {}]
  %s6 = inlined_call_operand.hbm [shape: f32[2,32], index: 6, kind: output, shape index: {}]
  %s7 = sld [smem:[#allocation0]]
  $region34: #{gcn_encoder_forward.1} parent=0
    _
  %s9 = ssub.s32 1, %s7
  %s10 = scalar_select 0, %s9, %s7
  $region1: #{gcn_encoder_forward.1} parent=0
    #allocation2 [shape = 'u8[1024]{0}', space=vmem, size = 0x400, scoped, tag = 'output window, operand 0, single buffered']
    #allocation3 [shape = 's32[1]{0}', space=sflag, size = 0x4, scoped, tag = 'scoped memory for gcn_encoder_forward.1']
    %11 = vsyncpa [#allocation3], 0
    // Predicated region
    $region2: #{gcn_encoder_forward.1} parent=1 // pred_check
      _
    $region3: #{gcn_encoder_forward.1} parent=1 // pred_check_branch
      %13 = sbr.rel (0) target = $region5
    $region4: #{gcn_encoder_forward.1} parent=1 // pred_region
      _
    $region5: #{gcn_encoder_forward.1} parent=1 // pred_fallthru
      _
    // Predicated region
    $region6: #{gcn_encoder_forward.1} parent=1 // pred_check
      _
    $region7: #{gcn_encoder_forward.1} parent=1 // pred_check_branch
      %15 = sbr.rel (0) target = $region9
    $region8: #{gcn_encoder_forward.1} parent=1 // pred_region
      _
    $region9: #{gcn_encoder_forward.1} parent=1 // pred_fallthru
      _
    // Predicated region
    $region10: #{gcn_encoder_forward.1} parent=1 // pred_check
      _
    $region11: #{gcn_encoder_forward.1} parent=1 // pred_check_branch
      %17 = sbr.rel (0) target = $region13
    $region12: #{gcn_encoder_forward.1} parent=1 // pred_region
      _
    $region13: #{gcn_encoder_forward.1} parent=1 // pred_fallthru
      _
    // Predicated region
    $region14: #{gcn_encoder_forward.1} parent=1 // pred_check
      _
    $region15: #{gcn_encoder_forward.1} parent=1 // pred_check_branch
      %19 = sbr.rel (0) target = $region17
    $region16: #{gcn_encoder_forward.1} parent=1 // pred_region
      _
    $region17: #{gcn_encoder_forward.1} parent=1 // pred_fallthru
      _
    // Predicated region
    $region18: #{gcn_encoder_forward.1} parent=1 // pred_check
      _
    $region19: #{gcn_encoder_forward.1} parent=1 // pred_check_branch
      %21 = sbr.rel (0) target = $region21
    $region20: #{gcn_encoder_forward.1} parent=1 // pred_region
      _
    $region21: #{gcn_encoder_forward.1} parent=1 // pred_fallthru
      _
    // Predicated region
    $region22: #{gcn_encoder_forward.1} parent=1 // pred_check
      _
    $region23: #{gcn_encoder_forward.1} parent=1 // pred_check_branch
      %23 = sbr.rel (0) target = $region25
    $region24: #{gcn_encoder_forward.1} parent=1 // pred_region
      _
    $region25: #{gcn_encoder_forward.1} parent=1 // pred_fallthru
      _
    %v24 = vld [vmem:[%s0] sm:$0xff]
    %v25 = vld [vmem:[%s0 + $0x8] sm:$0xff]
    %v26 = vlaneseq
    %v27 = vand.u32 %v26, 127
    %28 = vset.pattern.permute.xlu0 0
    %29 = vperm.xlu0 %28, %v24
    %v30 = vpop.permute.xlu0 %29
    %31 = vset.pattern.permute.xlu0 0
    %32 = vperm.xlu0 %31, %v25
    %v33 = vpop.permute.xlu0 %32
    %vm34 = vcmp.eq.s32.totalorder %v30, %v27
    %vm35 = vcmp.eq.s32.totalorder %v33, %v27
    %v36 = vsel %vm34, 1, 0
    %v37 = vsel %vm35, 1, 0
    %v38 = vcvt.s32.f32 %v36
    %v39 = vcvt.s32.f32 %v37
    %v40 = vld [vmem:[%s3] sm:$0xff]
    %v41 = vld [vmem:[%s3 + $0x8] sm:$0xff]
    %v42 = vld [vmem:[%s3 + $0x10] sm:$0xff]
    %v43 = vld [vmem:[%s3 + $0x18] sm:$0xff]
    %vm44 = vcmask 261120
    %v46 = vsel %vm44, %v38, 0
    %v49 = vsel %vm44, %v39, 0
    %51 = vmatprep.subr.mxu0 0.0
    %52 = vmatpush1.msra.mxu0 %v40
    %53 = vmatprep.subr.mxu0 0.0
    %54 = vmatpush1.msra.mxu0 %v41
    %55 = vmatprep.subr.mxu0 0.0
    %56 = vmatpush1.msra.mxu0 %v42
    %57 = vmatprep.subr.mxu0 0.0
    %58 = vmatpush1.msra.mxu0 %v43
    %59 = vmatprep.subr.mxu0 0.0
    %60 = vmatpush1.msra.mxu0 0.0
    %61 = vmatprep.subr.mxu0 0.0
    %62 = vmatpush1.msra.mxu0 0.0
    %63 = vmatprep.subr.mxu0 0.0
    %64 = vmatpush1.msra.mxu0 0.0
    %65 = vmatprep.subr.mxu0 0.0
    %66 = vmatpush1.msra.mxu0 0.0
    %67 = vmatprep.subr.mxu0 0.0
    %68 = vmatpush1.msra.mxu0 0.0
    %69 = vmatprep.subr.mxu0 0.0
    %70 = vmatpush1.msra.mxu0 0.0
    %71 = vmatprep.subr.mxu0 0.0
    %72 = vmatpush1.msra.mxu0 0.0
    %73 = vmatprep.subr.mxu0 0.0
    %74 = vmatpush1.msra.mxu0 0.0
    %75 = vmatprep.subr.mxu0 0.0
    %76 = vmatpush1.msra.mxu0 0.0
    %77 = vmatprep.subr.mxu0 0.0
    %78 = vmatpush1.msra.mxu0 0.0
    %79 = vmatprep.subr.mxu0 0.0
    %80 = vmatpush1.msra.mxu0 0.0
    %81 = vmatprep.subr.mxu0 0.0
    %82 = vmatpush1.msra.mxu0 0.0
    %83 = vmatprep.subr.mxu0 0.0
    %84 = vmatpush1.msra.mxu0 0.0
    %85 = vmatprep.subr.mxu0 0.0
    %86 = vmatpush1.msra.mxu0 0.0
    %87 = vmatprep.subr.mxu0 0.0
    %88 = vmatpush1.msra.mxu0 0.0
    %89 = vmatprep.subr.mxu0 0.0
    %90 = vmatpush1.msra.mxu0 0.0
    %91 = vmatprep.subr.mxu0 0.0
    %92 = vmatpush1.msra.mxu0 0.0
    %93 = vmatprep.subr.mxu0 0.0
    %94 = vmatpush1.msra.mxu0 0.0
    %95 = vmatprep.subr.mxu0 0.0
    %96 = vmatpush1.msra.mxu0 0.0
    %97 = vmatprep.subr.mxu0 0.0
    %98 = vmatpush1.msra.mxu0 0.0
    %99 = vmatprep.subr.mxu0 0.0
    %100 = vmatpush1.msra.mxu0 0.0
    %101 = vmatprep.subr.mxu0 0.0
    %102 = vmatpush1.msra.mxu0 0.0
    %103 = vmatprep.subr.mxu0 0.0
    %104 = vmatpush1.msra.mxu0 0.0
    %105 = vmatprep.subr.mxu0 0.0
    %106 = vmatpush1.msra.mxu0 0.0
    %107 = vmatprep.subr.mxu0 0.0
    %108 = vmatpush1.msra.mxu0 0.0
    %109 = vmatprep.subr.mxu0 0.0
    %110 = vmatpush1.msra.mxu0 0.0
    %111 = vmatprep.subr.mxu0 0.0
    %112 = vmatpush1.msra.mxu0 0.0
    %113 = vmatprep.subr.mxu0 0.0
    %114 = vmatpush1.msra.mxu0 0.0
    %115 = vmatprep.mubr.f32.mxu0 0.0
    %116 = vmatmul.mubr.f32.gmra.mrb[0].mxu0 %v46
    %v117 = vpop.f32.mrb[0].mxu0
    %v118 = vadd.f32 0.0, %v117
    %v119 = vpop.f32.mrb[0].mxu0
    %120 = vmatprep.mubr.f32.mxu0 0.0
    %121 = vmatmul.mubr.f32.gmra.mrb[0].mxu0 %v49
    %v122 = vpop.f32.mrb[0].mxu0
    %v123 = vadd.f32 0.0, %v122
    %v124 = vpop.f32.mrb[0].mxu0
    %125 = vdwg.mxu0
    %v126 = vld [vmem:[%s2] sm:$0x7]
    %v127 = vlaneseq
    %v128 = vshrl.u32 %v127, 7
    %v129 = vadd.s32 %v128, 8
    %v130 = vcvt.s32.f32 %v128
    %v131 = vcvt.s32.f32 %v129
    %v132 = vlaneseq
    %v133 = vshrl.u32 %v132, 7
    %v134 = vsub.s32 0, %v133
    %v135 = vrot.slane %v126, %v134
    %vm136 = vcmp.eq.f32.partialorder %v135, %v130
    %vm137 = vcmp.eq.f32.partialorder %v135, %v131
    %v138 = vlaneseq
    %v139 = vshrl.u32 %v138, 7
    %v140 = vsub.s32 2, %v139
    %v141 = vrot.slane %v126, %v140
    %v142 = vsel %vm136, %v141, 0.0
    %v143 = vsel %vm137, %v141, 0.0
    %v144 = vlaneseq
    %v145 = vshrl.u32 %v144, 7
    %v146 = vsub.s32 1, %v145
    %v147 = vrot.slane %v126, %v146
    %vm148 = vcmp.eq.f32.partialorder %v147, %v130
    %vm149 = vcmp.eq.f32.partialorder %v147, %v131
    %v150 = vsel %vm148, 1, 0
    %v151 = vsel %vm149, 1, 0
    %v152 = vcvt.s32.f32 %v150
    %v153 = vcvt.s32.f32 %v151
    %vm154 = vcmask 326656
    %v156 = vsel %vm154, %v152, 0
    %v159 = vsel %vm154, %v153, 0
    %v162 = vsel %vm154, %v142, 0
    %v165 = vsel %vm154, %v143, 0
    %167 = vmatprep.subr.mxu0 0.0
    %168 = vmatpush1.xpose.msra.mxu0 %v162
    %169 = vmatprep.subr.mxu0 0.0
    %170 = vmatpush1.xpose.msra.mxu0 %v165
    %171 = vmatprep.subr.mxu0 0.0
    %172 = vmatpush1.xpose.msra.mxu0 0.0
    %173 = vmatprep.subr.mxu0 0.0
    %174 = vmatpush1.xpose.msra.mxu0 0.0
    %175 = vmatprep.subr.mxu0 0.0
    %176 = vmatpush1.xpose.msra.mxu0 0.0
    %177 = vmatprep.subr.mxu0 0.0
    %178 = vmatpush1.xpose.msra.mxu0 0.0
    %179 = vmatprep.subr.mxu0 0.0
    %180 = vmatpush1.xpose.msra.mxu0 0.0
    %181 = vmatprep.subr.mxu0 0.0
    %182 = vmatpush1.xpose.msra.mxu0 0.0
    %183 = vmatprep.subr.mxu0 0.0
    %184 = vmatpush1.xpose.msra.mxu0 0.0
    %185 = vmatprep.subr.mxu0 0.0
    %186 = vmatpush1.xpose.msra.mxu0 0.0
    %187 = vmatprep.subr.mxu0 0.0
    %188 = vmatpush1.xpose.msra.mxu0 0.0
    %189 = vmatprep.subr.mxu0 0.0
    %190 = vmatpush1.xpose.msra.mxu0 0.0
    %191 = vmatprep.subr.mxu0 0.0
    %192 = vmatpush1.xpose.msra.mxu0 0.0
    %193 = vmatprep.subr.mxu0 0.0
    %194 = vmatpush1.xpose.msra.mxu0 0.0
    %195 = vmatprep.subr.mxu0 0.0
    %196 = vmatpush1.xpose.msra.mxu0 0.0
    %197 = vmatprep.subr.mxu0 0.0
    %198 = vmatpush1.xpose.msra.mxu0 0.0
    %199 = vmatprep.subr.mxu0 0.0
    %200 = vmatpush1.xpose.msra.mxu0 0.0
    %201 = vmatprep.subr.mxu0 0.0
    %202 = vmatpush1.xpose.msra.mxu0 0.0
    %203 = vmatprep.subr.mxu0 0.0
    %204 = vmatpush1.xpose.msra.mxu0 0.0
    %205 = vmatprep.subr.mxu0 0.0
    %206 = vmatpush1.xpose.msra.mxu0 0.0
    %207 = vmatprep.subr.mxu0 0.0
    %208 = vmatpush1.xpose.msra.mxu0 0.0
    %209 = vmatprep.subr.mxu0 0.0
    %210 = vmatpush1.xpose.msra.mxu0 0.0
    %211 = vmatprep.subr.mxu0 0.0
    %212 = vmatpush1.xpose.msra.mxu0 0.0
    %213 = vmatprep.subr.mxu0 0.0
    %214 = vmatpush1.xpose.msra.mxu0 0.0
    %215 = vmatprep.subr.mxu0 0.0
    %216 = vmatpush1.xpose.msra.mxu0 0.0
    %217 = vmatprep.subr.mxu0 0.0
    %218 = vmatpush1.xpose.msra.mxu0 0.0
    %219 = vmatprep.subr.mxu0 0.0
    %220 = vmatpush1.xpose.msra.mxu0 0.0
    %221 = vmatprep.subr.mxu0 0.0
    %222 = vmatpush1.xpose.msra.mxu0 0.0
    %223 = vmatprep.subr.mxu0 0.0
    %224 = vmatpush1.xpose.msra.mxu0 0.0
    %225 = vmatprep.subr.mxu0 0.0
    %226 = vmatpush1.xpose.msra.mxu0 0.0
    %227 = vmatprep.subr.mxu0 0.0
    %228 = vmatpush1.xpose.msra.mxu0 0.0
    %229 = vmatprep.subr.mxu0 0.0
    %230 = vmatpush1.xpose.msra.mxu0 0.0
    %231 = vmatprep.mubr.f32.mxu0 0.0
    %232 = vmatmul.mubr.f32.gmra.mrb[0].mxu0 %v156
    %v233 = vpop.f32.mrb[0].mxu0
    %v234 = vadd.f32 0.0, %v233
    %v235 = vpop.f32.mrb[0].mxu0
    %236 = vmatprep.mubr.f32.mxu0 0.0
    %237 = vmatmul.mubr.f32.gmra.mrb[0].mxu0 %v159
    %v238 = vpop.f32.mrb[0].mxu0
    %v239 = vadd.f32 0.0, %v238
    %v240 = vpop.f32.mrb[0].mxu0
    %241 = vdwg.mxu0
    %v242 = vld [vmem:[%s5] sm:$0x1]
    %v244 = vlaneseq
    %v245 = vshrl.u32 %v244, 7
    %v246 = vsub.s32 0, %v245
    %v247 = vrot.slane %v242, %v246
    %vm249 = vcmask 130048
    %v251 = vsel %vm249, %v234, 0
    %v254 = vsel %vm249, %v239, 0
    %256 = vmatprep.subr.mxu0 0.0
    %257 = vmatpush1.msra.mxu0 %v118
    %258 = vmatprep.subr.mxu0 0.0
    %259 = vmatpush1.msra.mxu0 %v123
    %260 = vmatprep.subr.mxu0 0.0
    %261 = vmatpush1.msra.mxu0 0.0
    %262 = vmatprep.subr.mxu0 0.0
    %263 = vmatpush1.msra.mxu0 0.0
    %264 = vmatprep.subr.mxu0 0.0
    %265 = vmatpush1.msra.mxu0 0.0
    %266 = vmatprep.subr.mxu0 0.0
    %267 = vmatpush1.msra.mxu0 0.0
    %268 = vmatprep.subr.mxu0 0.0
    %269 = vmatpush1.msra.mxu0 0.0
    %270 = vmatprep.subr.mxu0 0.0
    %271 = vmatpush1.msra.mxu0 0.0
    %272 = vmatprep.subr.mxu0 0.0
    %273 = vmatpush1.msra.mxu0 0.0
    %274 = vmatprep.subr.mxu0 0.0
    %275 = vmatpush1.msra.mxu0 0.0
    %276 = vmatprep.subr.mxu0 0.0
    %277 = vmatpush1.msra.mxu0 0.0
    %278 = vmatprep.subr.mxu0 0.0
    %279 = vmatpush1.msra.mxu0 0.0
    %280 = vmatprep.subr.mxu0 0.0
    %281 = vmatpush1.msra.mxu0 0.0
    %282 = vmatprep.subr.mxu0 0.0
    %283 = vmatpush1.msra.mxu0 0.0
    %284 = vmatprep.subr.mxu0 0.0
    %285 = vmatpush1.msra.mxu0 0.0
    %286 = vmatprep.subr.mxu0 0.0
    %287 = vmatpush1.msra.mxu0 0.0
    %288 = vmatprep.subr.mxu0 0.0
    %289 = vmatpush1.msra.mxu0 0.0
    %290 = vmatprep.subr.mxu0 0.0
    %291 = vmatpush1.msra.mxu0 0.0
    %292 = vmatprep.subr.mxu0 0.0
    %293 = vmatpush1.msra.mxu0 0.0
    %294 = vmatprep.subr.mxu0 0.0
    %295 = vmatpush1.msra.mxu0 0.0
    %296 = vmatprep.subr.mxu0 0.0
    %297 = vmatpush1.msra.mxu0 0.0
    %298 = vmatprep.subr.mxu0 0.0
    %299 = vmatpush1.msra.mxu0 0.0
    %300 = vmatprep.subr.mxu0 0.0
    %301 = vmatpush1.msra.mxu0 0.0
    %302 = vmatprep.subr.mxu0 0.0
    %303 = vmatpush1.msra.mxu0 0.0
    %304 = vmatprep.subr.mxu0 0.0
    %305 = vmatpush1.msra.mxu0 0.0
    %306 = vmatprep.subr.mxu0 0.0
    %307 = vmatpush1.msra.mxu0 0.0
    %308 = vmatprep.subr.mxu0 0.0
    %309 = vmatpush1.msra.mxu0 0.0
    %310 = vmatprep.subr.mxu0 0.0
    %311 = vmatpush1.msra.mxu0 0.0
    %312 = vmatprep.subr.mxu0 0.0
    %313 = vmatpush1.msra.mxu0 0.0
    %314 = vmatprep.subr.mxu0 0.0
    %315 = vmatpush1.msra.mxu0 0.0
    %316 = vmatprep.subr.mxu0 0.0
    %317 = vmatpush1.msra.mxu0 0.0
    %318 = vmatprep.subr.mxu0 0.0
    %319 = vmatpush1.msra.mxu0 0.0
    %320 = vmatprep.mubr.f32.mxu0 0.0
    %321 = vmatmul.mubr.f32.gmra.mrb[0].mxu0 %v251
    %v322 = vpop.f32.mrb[0].mxu0
    %v323 = vadd.f32 %v247, %v322
    %v324 = vpop.f32.mrb[0].mxu0
    %325 = vmatprep.mubr.f32.mxu0 0.0
    %326 = vmatmul.mubr.f32.gmra.mrb[0].mxu0 %v254
    %v327 = vpop.f32.mrb[0].mxu0
    %v328 = vadd.f32 %v247, %v327
    %v329 = vpop.f32.mrb[0].mxu0
    %330 = vdwg.mxu0
    %v331 = vmax.f32 %v323, 0.0
    %v332 = vmax.f32 %v328, 0.0
    %v333 = vld [vmem:[%s4] sm:$0xff]
    %v334 = vld [vmem:[%s4 + $0x8] sm:$0xff]
    %v335 = vld [vmem:[%s4 + $0x10] sm:$0xff]
    %v336 = vld [vmem:[%s4 + $0x18] sm:$0xff]
    %v338 = vsel %vm44, %v331, 0
    %v341 = vsel %vm44, %v332, 0
    %343 = vmatprep.subr.mxu0 0.0
    %344 = vmatpush1.msra.mxu0 %v333
    %345 = vmatprep.subr.mxu0 0.0
    %346 = vmatpush1.msra.mxu0 %v334
    %347 = vmatprep.subr.mxu0 0.0
    %348 = vmatpush1.msra.mxu0 %v335
    %349 = vmatprep.subr.mxu0 0.0
    %350 = vmatpush1.msra.mxu0 %v336
    %351 = vmatprep.subr.mxu0 0.0
    %352 = vmatpush1.msra.mxu0 0.0
    %353 = vmatprep.subr.mxu0 0.0
    %354 = vmatpush1.msra.mxu0 0.0
    %355 = vmatprep.subr.mxu0 0.0
    %356 = vmatpush1.msra.mxu0 0.0
    %357 = vmatprep.subr.mxu0 0.0
    %358 = vmatpush1.msra.mxu0 0.0
    %359 = vmatprep.subr.mxu0 0.0
    %360 = vmatpush1.msra.mxu0 0.0
    %361 = vmatprep.subr.mxu0 0.0
    %362 = vmatpush1.msra.mxu0 0.0
    %363 = vmatprep.subr.mxu0 0.0
    %364 = vmatpush1.msra.mxu0 0.0
    %365 = vmatprep.subr.mxu0 0.0
    %366 = vmatpush1.msra.mxu0 0.0
    %367 = vmatprep.subr.mxu0 0.0
    %368 = vmatpush1.msra.mxu0 0.0
    %369 = vmatprep.subr.mxu0 0.0
    %370 = vmatpush1.msra.mxu0 0.0
    %371 = vmatprep.subr.mxu0 0.0
    %372 = vmatpush1.msra.mxu0 0.0
    %373 = vmatprep.subr.mxu0 0.0
    %374 = vmatpush1.msra.mxu0 0.0
    %375 = vmatprep.subr.mxu0 0.0
    %376 = vmatpush1.msra.mxu0 0.0
    %377 = vmatprep.subr.mxu0 0.0
    %378 = vmatpush1.msra.mxu0 0.0
    %379 = vmatprep.subr.mxu0 0.0
    %380 = vmatpush1.msra.mxu0 0.0
    %381 = vmatprep.subr.mxu0 0.0
    %382 = vmatpush1.msra.mxu0 0.0
    %383 = vmatprep.subr.mxu0 0.0
    %384 = vmatpush1.msra.mxu0 0.0
    %385 = vmatprep.subr.mxu0 0.0
    %386 = vmatpush1.msra.mxu0 0.0
    %387 = vmatprep.subr.mxu0 0.0
    %388 = vmatpush1.msra.mxu0 0.0
    %389 = vmatprep.subr.mxu0 0.0
    %390 = vmatpush1.msra.mxu0 0.0
    %391 = vmatprep.subr.mxu0 0.0
    %392 = vmatpush1.msra.mxu0 0.0
    %393 = vmatprep.subr.mxu0 0.0
    %394 = vmatpush1.msra.mxu0 0.0
    %395 = vmatprep.subr.mxu0 0.0
    %396 = vmatpush1.msra.mxu0 0.0
    %397 = vmatprep.subr.mxu0 0.0
    %398 = vmatpush1.msra.mxu0 0.0
    %399 = vmatprep.subr.mxu0 0.0
    %400 = vmatpush1.msra.mxu0 0.0
    %401 = vmatprep.subr.mxu0 0.0
    %402 = vmatpush1.msra.mxu0 0.0
    %403 = vmatprep.subr.mxu0 0.0
    %404 = vmatpush1.msra.mxu0 0.0
    %405 = vmatprep.subr.mxu0 0.0
    %406 = vmatpush1.msra.mxu0 0.0
    %407 = vmatprep.mubr.f32.mxu0 0.0
    %408 = vmatmul.mubr.f32.gmra.mrb[0].mxu0 %v338
    %v409 = vpop.f32.mrb[0].mxu0
    %v410 = vadd.f32 0.0, %v409
    %v411 = vpop.f32.mrb[0].mxu0
    %412 = vmatprep.mubr.f32.mxu0 0.0
    %413 = vmatmul.mubr.f32.gmra.mrb[0].mxu0 %v341
    %v414 = vpop.f32.mrb[0].mxu0
    %v415 = vadd.f32 0.0, %v414
    %v416 = vpop.f32.mrb[0].mxu0
    %417 = vdwg.mxu0
    %v418 = vld [vmem:[%s1] sm:$0x1]
    %v419 = vlaneseq
    %v420 = vshrl.u32 %v419, 7
    %v421 = vsub.s32 0, %v420
    %v422 = vrot.slane %v418, %v421
    %vm423 = vcmp.eq.s32.totalorder %v422, %v128
    %v424 = vsel %vm423, 1, 0
    %v425 = vcvt.s32.f32 %v424
    %vm426 = vcmask 123904
    %v427 = vsel %vm426, %v425, 0.0
    %428 = vadd.xlane.f32.xlu0 %v427
    %v429 = vpop.xlane.xlu0 %428
    %vm430 = vcmp.gt.f32.partialorder %v429, 0.0
    %v431 = vmax.f32 %v429, 1.0
    %v432 = vrcp.pop %v431
    %v433 = vmul.f32 %v425, %v432
    %434 = vrot.lane.b32.xlu0 %v247, 96
    %v435 = vpop.permute.xlu0 %434
    %v438 = vsel %vm249, %v433, 0
    %440 = vmatprep.subr.mxu0 0.0
    %441 = vmatpush1.msra.mxu0 %v410
    %442 = vmatprep.subr.mxu0 0.0
    %443 = vmatpush1.msra.mxu0 %v415
    %444 = vmatprep.subr.mxu0 0.0
    %445 = vmatpush1.msra.mxu0 0.0
    %446 = vmatprep.subr.mxu0 0.0
    %447 = vmatpush1.msra.mxu0 0.0
    %448 = vmatprep.subr.mxu0 0.0
    %449 = vmatpush1.msra.mxu0 0.0
    %450 = vmatprep.subr.mxu0 0.0
    %451 = vmatpush1.msra.mxu0 0.0
    %452 = vmatprep.subr.mxu0 0.0
    %453 = vmatpush1.msra.mxu0 0.0
    %454 = vmatprep.subr.mxu0 0.0
    %455 = vmatpush1.msra.mxu0 0.0
    %456 = vmatprep.subr.mxu0 0.0
    %457 = vmatpush1.msra.mxu0 0.0
    %458 = vmatprep.subr.mxu0 0.0
    %459 = vmatpush1.msra.mxu0 0.0
    %460 = vmatprep.subr.mxu0 0.0
    %461 = vmatpush1.msra.mxu0 0.0
    %462 = vmatprep.subr.mxu0 0.0
    %463 = vmatpush1.msra.mxu0 0.0
    %464 = vmatprep.subr.mxu0 0.0
    %465 = vmatpush1.msra.mxu0 0.0
    %466 = vmatprep.subr.mxu0 0.0
    %467 = vmatpush1.msra.mxu0 0.0
    %468 = vmatprep.subr.mxu0 0.0
    %469 = vmatpush1.msra.mxu0 0.0
    %470 = vmatprep.subr.mxu0 0.0
    %471 = vmatpush1.msra.mxu0 0.0
    %472 = vmatprep.subr.mxu0 0.0
    %473 = vmatpush1.msra.mxu0 0.0
    %474 = vmatprep.subr.mxu0 0.0
    %475 = vmatpush1.msra.mxu0 0.0
    %476 = vmatprep.subr.mxu0 0.0
    %477 = vmatpush1.msra.mxu0 0.0
    %478 = vmatprep.subr.mxu0 0.0
    %479 = vmatpush1.msra.mxu0 0.0
    %480 = vmatprep.subr.mxu0 0.0
    %481 = vmatpush1.msra.mxu0 0.0
    %482 = vmatprep.subr.mxu0 0.0
    %483 = vmatpush1.msra.mxu0 0.0
    %484 = vmatprep.subr.mxu0 0.0
    %485 = vmatpush1.msra.mxu0 0.0
    %486 = vmatprep.subr.mxu0 0.0
    %487 = vmatpush1.msra.mxu0 0.0
    %488 = vmatprep.subr.mxu0 0.0
    %489 = vmatpush1.msra.mxu0 0.0
    %490 = vmatprep.subr.mxu0 0.0
    %491 = vmatpush1.msra.mxu0 0.0
    %492 = vmatprep.subr.mxu0 0.0
    %493 = vmatpush1.msra.mxu0 0.0
    %494 = vmatprep.subr.mxu0 0.0
    %495 = vmatpush1.msra.mxu0 0.0
    %496 = vmatprep.subr.mxu0 0.0
    %497 = vmatpush1.msra.mxu0 0.0
    %498 = vmatprep.subr.mxu0 0.0
    %499 = vmatpush1.msra.mxu0 0.0
    %500 = vmatprep.subr.mxu0 0.0
    %501 = vmatpush1.msra.mxu0 0.0
    %502 = vmatprep.subr.mxu0 0.0
    %503 = vmatpush1.msra.mxu0 0.0
    %504 = vmatprep.mubr.f32.mxu0 0.0
    %505 = vmatmul.mubr.f32.gmra.mrb[0].mxu0 %v438
    %v506 = vpop.f32.mrb[0].mxu0
    %v507 = vadd.f32 %v435, %v506
    %v508 = vpop.f32.mrb[0].mxu0
    %509 = vdwg.mxu0
    %v510 = vsel %vm430, 1, 0
    %vm511 = vcmp.eq.s32.totalorder %v510, 1
    %v512 = vsel %vm511, %v507, 0.0
    %v513 = vlaneseq
    %v514 = vshrl.u32 %v513, 7
    %v515 = vsub.s32 0, %v514
    %v516 = vrot.slane %v425, %v515
    %518 = vbcast.lane.b32.xlu0 %v516, 256
    %v519 = vpop.permute.xlu0 %518
    %s521 = sor.u32 256, 8
    %522 = vbcast.lane.b32.xlu0 %v516, %s521
    %v523 = vpop.permute.xlu0 %522
    %v524 = vlaneseq
    %v525 = vshrl.u32 %v524, 7
    %v526 = vsub.s32 1, %v525
    %v527 = vrot.slane %v425, %v526
    %529 = vbcast.lane.b32.xlu0 %v527, 256
    %v530 = vpop.permute.xlu0 %529
    %s532 = sor.u32 256, 8
    %533 = vbcast.lane.b32.xlu0 %v527, %s532
    %v534 = vpop.permute.xlu0 %533
    %vm535 = vcmp.gt.f32.partialorder %v519, 0.0
    %vm536 = vcmp.gt.f32.partialorder %v523, 0.0
    %vm537 = vcmp.gt.f32.partialorder %v530, 0.0
    %vm538 = vcmp.gt.f32.partialorder %v534, 0.0
    %v539 = vsel %vm535, 1, 0
    %v540 = vsel %vm536, 1, 0
    %v541 = vsel %vm537, 1, 0
    %v542 = vsel %vm538, 1, 0
    %vm543 = vcmp.eq.s32.totalorder %v539, 1
    %vm544 = vcmp.eq.s32.totalorder %v540, 1
    %vm545 = vcmp.eq.s32.totalorder %v541, 1
    %vm546 = vcmp.eq.s32.totalorder %v542, 1
    %v547 = vsel %vm543, %v410, -inf
    %v548 = vsel %vm544, %v415, -inf
    %v549 = vsel %vm545, %v410, -inf
    %v550 = vsel %vm546, %v415, -inf
    %v551 = vsel %vm249, %v547, -inf
    %v552 = vsel %vm249, %v548, -inf
    %v553 = vmax.f32 %v551, %v552
    %v554 = vrot.slane %v553, 4
    %v555 = vmax.f32 %v553, %v554
    %v556 = vrot.slane %v555, 2
    %v557 = vmax.f32 %v555, %v556
    %v558 = vrot.slane %v557, 1
    %v559 = vmax.f32 %v557, %v558
    %v560 = vsel %vm249, %v549, -inf
    %v561 = vsel %vm249, %v550, -inf
    %v562 = vmax.f32 %v560, %v561
    %v563 = vrot.slane %v562, 4
    %v564 = vmax.f32 %v562, %v563
    %v565 = vrot.slane %v564, 2
    %v566 = vmax.f32 %v564, %v565
    %v567 = vrot.slane %v566, 1
    %v568 = vmax.f32 %v566, %v567
    %v569 = vadd.f32 %v559, %v435
    %v570 = vadd.f32 %v568, %v435
    %v573 = vrot.slane %v570, 7
    %vm574 = vcmask 1041409
    %v575 = vsel %vm574, %v573, %v569
    %v577 = vsel %vm511, %v575, 0.0
    %578 = vst.msk [vmem:[#allocation2] sm:$0x3] %vm426, %v512
    %580 = vrot.lane.b32.xlu0 %v577, 16
    %v581 = vpop.permute.xlu0 %580
    %vm583 = vcmask 255104
    %584 = vst.msk [vmem:[#allocation2] sm:$0x3] %vm583, %v581
    // Predicated region
    $region26: #{gcn_encoder_forward.1} parent=1 // pred_check
      _
    $region27: #{gcn_encoder_forward.1} parent=1 // pred_check_branch
      %586 = sbr.rel (0) target = $region29
    $region28: #{gcn_encoder_forward.1} parent=1 // pred_region
      %s588 = ssub.s32 32, 32
      %589 = vsyncadd [#allocation3], %s588
      %s591 = sshll.u32 [#allocation2], 4
      %s592 = int_to_ptr.vmem [resolvable:$true] %s591
      %594 = dma.vmem_to_hbm [thread:$0]  %s592, 32, %s6, [#allocation3]
    $region29: #{gcn_encoder_forward.1} parent=1 // pred_fallthru
      _
    // Predicated region
    $region30: #{gcn_encoder_forward.1} parent=1 // pred_check
      _
    $region31: #{gcn_encoder_forward.1} parent=1 // pred_check_branch
      %596 = sbr.rel (0) target = $region33
    $region32: #{gcn_encoder_forward.1} parent=1 // pred_region
      %597 = dma.done [#allocation3], 32
    $region33: #{gcn_encoder_forward.1} parent=1 // pred_fallthru
      _
    %598 = vsyncpa [#allocation3], 1

</llo_original>
